<compile_context>
chip_gen: v7x
topology: tpu7x:2x2x1
jax: 0.10.0
libtpu: 0.0.40
codegen_flags: <defaults>
</compile_context>

<pallas_src>
import jax
import jax.numpy as jnp
from jax.experimental import pallas as pl
from jax.experimental.pallas import tpu as pltpu


def _round_up(v: int, m: int) -> int:
    return ((v + m - 1) // m) * m


def _linear_bias_kernel(x_ref, wt_ref, b_ref, o_ref):
    # x_ref : (tm, C)   one M-tile of the flattened (B*N, C) input (activation dtype)
    # wt_ref: (C, Kp)   pre-transposed, K-padded weight (compute dtype, VMEM-resident)
    # b_ref : (1, Kp)   K-padded f32 bias (VMEM-resident, broadcast over rows)
    # o_ref : (tm, Kp)  lane-dense output tile (activation dtype)
    x = x_ref[...].astype(wt_ref.dtype)          # in-kernel cast: free on the VPU
    acc = jnp.dot(x, wt_ref[...], preferred_element_type=jnp.float32)
    o_ref[...] = (acc + b_ref[...]).astype(o_ref.dtype)


def prepare_head_params(weight, bias, compute_dtype=jnp.bfloat16):
    """One-time parameter prep (at load time, NOT per forward call).

    weight: (K, C) PyTorch nn.Linear layout.  bias: (K,)
    Returns (wt_pad, bias_pad): wt_pad (C, Kp) in compute_dtype, bias_pad (1, Kp)
    f32, with Kp = round_up(K, 128) so the kernel output is 128-lane dense.
    compute_dtype=None keeps the original weight dtype (e.g. full f32).
    """
    K, C = weight.shape
    Kp = _round_up(K, 128)
    wt = weight.T                                        # (C, K), done once
    bias = bias.astype(jnp.float32)
    if Kp != K:
        wt = jnp.pad(wt, ((0, 0), (0, Kp - K)))
        bias = jnp.pad(bias, (0, Kp - K))
    if compute_dtype is not None:
        wt = wt.astype(compute_dtype)
    return wt, bias.reshape(1, Kp)


def _pick_tiling(M, block_m):
    """Row-tile size & grid: >= 2 grid steps for non-trivial M (v7x megacore),
    8-row (128-row for large M) alignment, and a balanced trailing tile."""
    if M <= 8:
        return M, 1
    block_m = max(8, (block_m // 8) * 8)
    align = 128 if M >= 1024 else 8
    tm = min(block_m, _round_up(pl.cdiv(M, 2), align))   # guarantees >= 2 steps
    grid_m = pl.cdiv(M, tm)
    tm = min(tm, _round_up(pl.cdiv(M, grid_m), align))   # avoid a tiny last tile
    return tm, pl.cdiv(M, tm)


def _vmem_limit_bytes(tm, C, Kp, x_dtype, w_dtype, out_dtype, w_bufs):
    """Explicit scoped-VMEM request derived from the layout-padded tile footprint."""
    tm_p = _round_up(tm, 8)
    c_lane = _round_up(C, 128)
    x_b = 2 * tm_p * c_lane * jnp.dtype(x_dtype).itemsize            # 2x-buffered x tile
    w_b = w_bufs * (_round_up(C, 8) * Kp * jnp.dtype(w_dtype).itemsize + 8 * Kp * 4)
    o_b = 2 * tm_p * Kp * max(jnp.dtype(out_dtype).itemsize, 4)       # out tile + f32 acc headroom
    est = x_b + w_b + o_b
    return int(min(64 * 1024 * 1024, max(32 * 1024 * 1024, 2 * est)))


def classification_head_pallas(x, wt_pad, bias_pad, num_classes, *, block_m=512):
    """Pallas path: x (B, N, C), wt_pad (C, Kp), bias_pad (1, Kp)."""
    B, N, C = x.shape
    Cw, Kp = wt_pad.shape
    assert Cw == C, (Cw, C)
    M = B * N
    out_dtype = x.dtype

    x2d = x.reshape(M, C)                 # glue reshape only — NO dtype cast here
    tm, grid_m = _pick_tiling(M, block_m)

    x_isz = jnp.dtype(x.dtype).itemsize
    w_isz = jnp.dtype(wt_pad.dtype).itemsize
    o_isz = jnp.dtype(out_dtype).itemsize
    cost = pl.CostEstimate(
        flops=2 * M * C * Kp,
        transcendentals=0,
        bytes_accessed=M * C * x_isz + C * Kp * w_isz + Kp * 4 + M * Kp * o_isz,
    )

    def run(single_buffer_consts):
        if single_buffer_consts:
            w_spec = pl.BlockSpec((C, Kp), lambda i: (0, 0),
                                  pipeline_mode=pl.Buffered(1))
            b_spec = pl.BlockSpec((1, Kp), lambda i: (0, 0),
                                  pipeline_mode=pl.Buffered(1))
            w_bufs = 1
        else:
            w_spec = pl.BlockSpec((C, Kp), lambda i: (0, 0))
            b_spec = pl.BlockSpec((1, Kp), lambda i: (0, 0))
            w_bufs = 2
        return pl.pallas_call(
            _linear_bias_kernel,
            out_shape=jax.ShapeDtypeStruct((M, Kp), out_dtype),
            grid=(grid_m,),
            in_specs=[
                pl.BlockSpec((tm, C), lambda i: (i, 0)),     # pipelined over M
                w_spec,                                      # weight: VMEM-resident
                b_spec,                                      # bias:   VMEM-resident
            ],
            out_specs=pl.BlockSpec((tm, Kp), lambda i: (i, 0)),
            compiler_params=pltpu.CompilerParams(
                dimension_semantics=("parallel",),           # independent M tiles
                vmem_limit_bytes=_vmem_limit_bytes(
                    tm, C, Kp, x.dtype, wt_pad.dtype, out_dtype, w_bufs),
            ),
            cost_estimate=cost,
        )(x2d, wt_pad, bias_pad)

    try:
        out = run(single_buffer_consts=True)
    except Exception:
        # pipeline_mode=pl.Buffered(1) not supported by this jax build; fall back
        # to default double buffering (costs extra VMEM only, never correctness).
        out = run(single_buffer_consts=False)

    # TODO(synk): for tiny K the consumer (argmax/softmax/loss) could be fused here
    # instead of slicing the padded (M, Kp) buffer in a separate XLA op.
    out = out[:, :num_classes]                            # drop K lane padding
    out = out.reshape(B, N, num_classes)
    if N == 1:                                            # torch .squeeze(dim=1)
        out = out.reshape(B, num_classes)
    return out


def classification_output_adapter(x, weight, bias, *, force_pallas=False,
                                  compute_dtype=jnp.bfloat16, block_m=512):
    """Convenience wrapper taking PyTorch-layout params (weight (K, C), bias (K,)).

    For production, call prepare_head_params() once at parameter-load time and
    classification_head_pallas() per forward, so the transpose/pad/cast stays
    off the hot path.
    """
    B, N, C = x.shape
    K = weight.shape[0]
    M = B * N
    Kp = _round_up(K, 128)

    # Tiny problems: fixed pallas_call overhead dwarfs the work; let XLA fuse.
    if not force_pallas and (M * C * Kp) < (1 << 18):
        y = jnp.einsum("bnc,kc->bnk", x, weight) + bias
        return y.reshape(B, K) if N == 1 else y

    wt_pad, bias_pad = prepare_head_params(weight, bias, compute_dtype)
    return classification_head_pallas(x, wt_pad, bias_pad, K, block_m=block_m)


if __name__ == "__main__":
    # Case 1: module-scale demo shapes (one output query per example),
    # f32 compute so the Pallas result matches the reference tightly.
    B, N, C, K = 2, 1, 32, 10
    kx, kw, kb = jax.random.split(jax.random.PRNGKey(0), 3)
    x = jax.random.normal(kx, (B, N, C), dtype=jnp.float32)
    weight = jax.random.normal(kw, (K, C), dtype=jnp.float32) * 0.02
    bias = jax.random.normal(kb, (K,), dtype=jnp.float32) * 0.01

    y = classification_output_adapter(x, weight, bias, force_pallas=True,
                                      compute_dtype=jnp.float32)
    y = jax.block_until_ready(y)
    ref = (x @ weight.T + bias).squeeze(axis=1)
    assert y.shape == (B, K), y.shape
    assert y.dtype == x.dtype, y.dtype
    assert jnp.allclose(y, ref, atol=1e-5, rtol=1e-5)

    # Case 2: modest batch exercising the M grid (>= 2 steps), K lane padding and
    # the default bf16-weight compute path, with params prepared out of band.
    B2, N2, C2, K2 = 48, 1, 128, 130
    k1, k2, k3 = jax.random.split(jax.random.PRNGKey(1), 3)
    x2 = jax.random.normal(k1, (B2, N2, C2), dtype=jnp.float32)
    w2 = jax.random.normal(k2, (K2, C2), dtype=jnp.float32) * 0.02
    b2 = jax.random.normal(k3, (K2,), dtype=jnp.float32) * 0.5
    wt2, bp2 = prepare_head_params(w2, b2)               # once, at "param load"
    y2 = classification_head_pallas(x2, wt2, bp2, K2)
    y2 = jax.block_until_ready(y2)
    ref2 = (jnp.einsum("bnc,kc->bnk", x2, w2,
                       precision=jax.lax.Precision.HIGHEST) + b2).squeeze(axis=1)
    assert y2.shape == (B2, K2), y2.shape
    assert jnp.allclose(y2, ref2, atol=3e-2, rtol=3e-2)  # bf16-compute tolerance

    print("KERNEL_OK")
</pallas_src>

<mosaic_0001>
module attributes {stable_mosaic.version = 11 : i64} {
  func.func @_linear_bias_kernel(%arg0: i32, %arg1: memref<2x32xf32, #tpu.memory_space<vmem>>, %arg2: memref<32x128xf32, #tpu.memory_space<vmem>>, %arg3: memref<1x128xf32, #tpu.memory_space<vmem>>, %arg4: memref<2x128xf32, #tpu.memory_space<vmem>>) attributes {dimension_semantics = [#tpu.dimension_semantics<parallel>], iteration_bounds = array<i64: 1>, scalar_prefetch = 0 : i64, scratch_operands = 0 : i64, tpu.core_type = #tpu.core_type<tc>, window_params = [{transform_indices = @transform_0, window_bounds = array<i64: 2, 32>}, {pipeline_mode = #tpu.pipeline_mode<synchronous>, transform_indices = @transform_1, window_bounds = array<i64: 32, 128>}, {pipeline_mode = #tpu.pipeline_mode<synchronous>, transform_indices = @transform_2, window_bounds = array<i64: 1, 128>}, {transform_indices = @transform_3, window_bounds = array<i64: 2, 128>}]} {
    %c0 = arith.constant 0 : index
    %c0_0 = arith.constant 0 : index
    %0 = vector.load %arg1[%c0, %c0_0] : memref<2x32xf32, #tpu.memory_space<vmem>>, vector<2x32xf32>
    %c0_1 = arith.constant 0 : index
    %c0_2 = arith.constant 0 : index
    %1 = vector.load %arg2[%c0_1, %c0_2] : memref<32x128xf32, #tpu.memory_space<vmem>>, vector<32x128xf32>
    %cst = arith.constant dense<0.000000e+00> : vector<2x128xf32>
    %2 = tpu.matmul %0, %1, %cst {dimension_numbers = #tpu.dot_dimension_numbers<[1], [0], [0], [1], [0, 0, 1, 1], [], []>} : vector<2x32xf32>, vector<32x128xf32>, vector<2x128xf32> -> vector<2x128xf32>
    %c0_3 = arith.constant 0 : index
    %c0_4 = arith.constant 0 : index
    %3 = vector.load %arg3[%c0_3, %c0_4] : memref<1x128xf32, #tpu.memory_space<vmem>>, vector<1x128xf32>
    %4 = vector.broadcast %3 : vector<1x128xf32> to vector<2x128xf32>
    %5 = arith.addf %2, %4 : vector<2x128xf32>
    %c0_5 = arith.constant 0 : index
    %c0_6 = arith.constant 0 : index
    %6 = vector.load %arg4[%c0_5, %c0_6] : memref<2x128xf32, #tpu.memory_space<vmem>>, vector<2x128xf32>
    tpu.vector_store %arg4[%c0_5, %c0_6], %5 {strides = array<i32>} : memref<2x128xf32, #tpu.memory_space<vmem>>, vector<2x128xf32>,
    return
  }
  func.func @transform_0(%arg0: i32) -> (i32, i32) {
    %c0_i32 = arith.constant 0 : i32
    %c0_i32_0 = arith.constant 0 : i32
    return %arg0, %c0_i32 : i32, i32
  }
  func.func @transform_1(%arg0: i32) -> (i32, i32) {
    %c0_i32 = arith.constant 0 : i32
    %c0_i32_0 = arith.constant 0 : i32
    %c0_i32_1 = arith.constant 0 : i32
    return %c0_i32, %c0_i32_0 : i32, i32
  }
  func.func @transform_2(%arg0: i32) -> (i32, i32) {
    %c0_i32 = arith.constant 0 : i32
    %c0_i32_0 = arith.constant 0 : i32
    %c0_i32_1 = arith.constant 0 : i32
    return %c0_i32, %c0_i32_0 : i32, i32
  }
  func.func @transform_3(%arg0: i32) -> (i32, i32) {
    %c0_i32 = arith.constant 0 : i32
    %c0_i32_0 = arith.constant 0 : i32
    return %arg0, %c0_i32 : i32, i32
  }
}

module attributes {stable_mosaic.version = 11 : i64} {
  func.func @_linear_bias_kernel(%arg0: i32, %arg1: memref<2x32xf32, #tpu.memory_space<vmem>>, %arg2: memref<32x128xf32, #tpu.memory_space<vmem>>, %arg3: memref<1x128xf32, #tpu.memory_space<vmem>>, %arg4: memref<2x128xf32, #tpu.memory_space<vmem>>) attributes {dimension_semantics = [#tpu.dimension_semantics<parallel>], iteration_bounds = array<i64: 1>, scalar_prefetch = 0 : i64, scratch_operands = 0 : i64, tpu.core_type = #tpu.core_type<tc>, window_params = [{transform_indices = @transform_0, window_bounds = array<i64: 2, 32>}, {pipeline_mode = #tpu.pipeline_mode<synchronous>, transform_indices = @transform_1, window_bounds = array<i64: 32, 128>}, {pipeline_mode = #tpu.pipeline_mode<synchronous>, transform_indices = @transform_2, window_bounds = array<i64: 1, 128>}, {transform_indices = @transform_3, window_bounds = array<i64: 2, 128>}]} {
    %c0 = arith.constant 0 : index
    %c0_0 = arith.constant 0 : index
    %0 = vector.load %arg1[%c0, %c0_0] : memref<2x32xf32, #tpu.memory_space<vmem>>, vector<2x32xf32>
    %c0_1 = arith.constant 0 : index
    %c0_2 = arith.constant 0 : index
    %1 = vector.load %arg2[%c0_1, %c0_2] : memref<32x128xf32, #tpu.memory_space<vmem>>, vector<32x128xf32>
    %cst = arith.constant dense<0.000000e+00> : vector<2x128xf32>
    %2 = tpu.matmul %0, %1, %cst {dimension_numbers = #tpu.dot_dimension_numbers<[1], [0], [0], [1], [0, 0, 1, 1], [], []>} : vector<2x32xf32>, vector<32x128xf32>, vector<2x128xf32> -> vector<2x128xf32>
    %c0_3 = arith.constant 0 : index
    %c0_4 = arith.constant 0 : index
    %3 = vector.load %arg3[%c0_3, %c0_4] : memref<1x128xf32, #tpu.memory_space<vmem>>, vector<1x128xf32>
    %4 = vector.broadcast %3 : vector<1x128xf32> to vector<2x128xf32>
    %5 = arith.addf %2, %4 : vector<2x128xf32>
    %c0_5 = arith.constant 0 : index
    %c0_6 = arith.constant 0 : index
    %6 = vector.load %arg4[%c0_5, %c0_6] : memref<2x128xf32, #tpu.memory_space<vmem>>, vector<2x128xf32>
    tpu.vector_store %arg4[%c0_5, %c0_6], %5 {strides = array<i32>} : memref<2x128xf32, #tpu.memory_space<vmem>>, vector<2x128xf32>,
    return
  }
  func.func @transform_0(%arg0: i32) -> (i32, i32) {
    %c0_i32 = arith.constant 0 : i32
    %c0_i32_0 = arith.constant 0 : i32
    return %arg0, %c0_i32 : i32, i32
  }
  func.func @transform_1(%arg0: i32) -> (i32, i32) {
    %c0_i32 = arith.constant 0 : i32
    %c0_i32_0 = arith.constant 0 : i32
    %c0_i32_1 = arith.constant 0 : i32
    return %c0_i32, %c0_i32_0 : i32, i32
  }
  func.func @transform_2(%arg0: i32) -> (i32, i32) {
    %c0_i32 = arith.constant 0 : i32
    %c0_i32_0 = arith.constant 0 : i32
    %c0_i32_1 = arith.constant 0 : i32
    return %c0_i32, %c0_i32_0 : i32, i32
  }
  func.func @transform_3(%arg0: i32) -> (i32, i32) {
    %c0_i32 = arith.constant 0 : i32
    %c0_i32_0 = arith.constant 0 : i32
    return %arg0, %c0_i32 : i32, i32
  }
}

</mosaic_0001>

<llo_original>
// kernel: tpu_custom_call.1
$region0: #{tpu_custom_call.1}
  #allocation0 [shape = 'u32[]', space=smem, size = 0x4, offset = 0x4, fixed_abs, tag = 'smem constant byte address 0x4 - core index']
  #allocation1 [shape = 'u32[144,128]{1,0:T(1,128)}', space=vmem, size = 0x12000, scoped, tag = 'internal scratch']
  %s0 = inlined_call_operand.hbm [shape: f32[2,32], index: 0, kind: input, shape index: {}]
  %s1 = inlined_call_operand.hbm [shape: f32[32,128], index: 1, kind: input, shape index: {}]
  %s2 = inlined_call_operand.vmem [shape: f32[1,128], index: 2, kind: input, shape index: {}]
  %s3 = inlined_call_operand.hbm [shape: f32[2,128], index: 3, kind: output, shape index: {}]
  %s4 = sld [smem:[#allocation0]]
  $region30: #{tpu_custom_call.1} parent=0
    _
  %s6 = ssub.s32 1, %s4
  %s7 = scalar_select 0, %s6, %s4
  $region1: #{tpu_custom_call.1} parent=0
    #allocation2 [shape = 'u8[1024]{0}', space=vmem, size = 0x400, scoped, tag = 'input window, operand 0, single buffered']
    #allocation3 [shape = 's32[1]{0}', space=sflag, size = 0x4, scoped, tag = 'scoped memory for tpu_custom_call.1']
    #allocation4 [shape = 's32[1]{0}', space=sflag, size = 0x4, scoped, tag = 'scoped memory for tpu_custom_call.1']
    #allocation5 [shape = 'u8[16384]{0}', space=vmem, size = 0x4000, scoped, tag = 'input window, operand 1, single buffered']
    #allocation6 [shape = 's32[1]{0}', space=sflag, size = 0x4, scoped, tag = 'scoped memory for tpu_custom_call.1']
    #allocation7 [shape = 'u8[1024]{0}', space=vmem, size = 0x400, scoped, tag = 'output window, operand 0, single buffered']
    %8 = vsyncpa [#allocation3], 0
    %9 = vsyncpa [#allocation6], 0
    %10 = vsyncpa [#allocation4], 0
    // Predicated region
    $region2: #{tpu_custom_call.1} parent=1 // pred_check
      _
    $region3: #{tpu_custom_call.1} parent=1 // pred_check_branch
      %12 = sbr.rel (0) target = $region5
    $region4: #{tpu_custom_call.1} parent=1 // pred_region
      %s14 = ssub.s32 32, 32
      %15 = vsyncadd [#allocation3], %s14
      %s17 = sshll.u32 [#allocation2], 4
      %s18 = int_to_ptr.vmem [resolvable:$true] %s17
      %20 = dma.hbm_to_vmem [thread:$0]  %s0, 32, %s18, [#allocation3]
    $region5: #{tpu_custom_call.1} parent=1 // pred_fallthru
      _
    // Predicated region
    $region6: #{tpu_custom_call.1} parent=1 // pred_check
      _
    $region7: #{tpu_custom_call.1} parent=1 // pred_check_branch
      %22 = sbr.rel (0) target = $region9
    $region8: #{tpu_custom_call.1} parent=1 // pred_region
      %s24 = ssub.s32 512, 512
      %25 = vsyncadd [#allocation6], %s24
      %s26 = sshll.u32 [#allocation5], 4
      %s27 = int_to_ptr.vmem [resolvable:$true] %s26
      %32 = dma.hbm_to_vmem [thread:$0]  %s1, 512, %s27, [#allocation6], 128, 128, 8
    $region9: #{tpu_custom_call.1} parent=1 // pred_fallthru
      _
    // Predicated region
    $region10: #{tpu_custom_call.1} parent=1 // pred_check
      _
    $region11: #{tpu_custom_call.1} parent=1 // pred_check_branch
      %34 = sbr.rel (0) target = $region13
    $region12: #{tpu_custom_call.1} parent=1 // pred_region
      _
    $region13: #{tpu_custom_call.1} parent=1 // pred_fallthru
      _
    // Predicated region
    $region14: #{tpu_custom_call.1} parent=1 // pred_check
      _
    $region15: #{tpu_custom_call.1} parent=1 // pred_check_branch
      %36 = sbr.rel (0) target = $region17
    $region16: #{tpu_custom_call.1} parent=1 // pred_region
      %37 = dma.done [#allocation3], 32
    $region17: #{tpu_custom_call.1} parent=1 // pred_fallthru
      _
    // Predicated region
    $region18: #{tpu_custom_call.1} parent=1 // pred_check
      _
    $region19: #{tpu_custom_call.1} parent=1 // pred_check_branch
      %39 = sbr.rel (0) target = $region21
    $region20: #{tpu_custom_call.1} parent=1 // pred_region
      %40 = dma.done [#allocation6], 512
    $region21: #{tpu_custom_call.1} parent=1 // pred_fallthru
      _
    %v41 = vld [vmem:[#allocation2] sm:$0x3]
    %v42 = vld [vmem:[#allocation5] sm:$0xff]
    %v43 = vld [vmem:[#allocation5 + $0x8] sm:$0xff]
    %v44 = vld [vmem:[#allocation5 + $0x10] sm:$0xff]
    %v45 = vld [vmem:[#allocation5 + $0x18] sm:$0xff]
    %v46 = vld [vmem:[%s2] sm:$0x1]
    %v48 = vlaneseq
    %v49 = vshrl.u32 %v48, 7
    %v50 = vsub.s32 0, %v49
    %v51 = vrot.slane %v46, %v50
    %vm53 = vcmask 261120
    %v55 = vsel %vm53, %v41, 0
    %57 = vmatprep.subr.mxu0 0.0
    %58 = vmatpush1.msra.mxu0 %v42
    %59 = vmatprep.subr.mxu0 0.0
    %60 = vmatpush1.msra.mxu0 %v43
    %61 = vmatprep.subr.mxu0 0.0
    %62 = vmatpush1.msra.mxu0 %v44
    %63 = vmatprep.subr.mxu0 0.0
    %64 = vmatpush1.msra.mxu0 %v45
    %65 = vmatprep.subr.mxu0 0.0
    %66 = vmatpush1.msra.mxu0 0.0
    %67 = vmatprep.subr.mxu0 0.0
    %68 = vmatpush1.msra.mxu0 0.0
    %69 = vmatprep.subr.mxu0 0.0
    %70 = vmatpush1.msra.mxu0 0.0
    %71 = vmatprep.subr.mxu0 0.0
    %72 = vmatpush1.msra.mxu0 0.0
    %73 = vmatprep.subr.mxu0 0.0
    %74 = vmatpush1.msra.mxu0 0.0
    %75 = vmatprep.subr.mxu0 0.0
    %76 = vmatpush1.msra.mxu0 0.0
    %77 = vmatprep.subr.mxu0 0.0
    %78 = vmatpush1.msra.mxu0 0.0
    %79 = vmatprep.subr.mxu0 0.0
    %80 = vmatpush1.msra.mxu0 0.0
    %81 = vmatprep.subr.mxu0 0.0
    %82 = vmatpush1.msra.mxu0 0.0
    %83 = vmatprep.subr.mxu0 0.0
    %84 = vmatpush1.msra.mxu0 0.0
    %85 = vmatprep.subr.mxu0 0.0
    %86 = vmatpush1.msra.mxu0 0.0
    %87 = vmatprep.subr.mxu0 0.0
    %88 = vmatpush1.msra.mxu0 0.0
    %89 = vmatprep.subr.mxu0 0.0
    %90 = vmatpush1.msra.mxu0 0.0
    %91 = vmatprep.subr.mxu0 0.0
    %92 = vmatpush1.msra.mxu0 0.0
    %93 = vmatprep.subr.mxu0 0.0
    %94 = vmatpush1.msra.mxu0 0.0
    %95 = vmatprep.subr.mxu0 0.0
    %96 = vmatpush1.msra.mxu0 0.0
    %97 = vmatprep.subr.mxu0 0.0
    %98 = vmatpush1.msra.mxu0 0.0
    %99 = vmatprep.subr.mxu0 0.0
    %100 = vmatpush1.msra.mxu0 0.0
    %101 = vmatprep.subr.mxu0 0.0
    %102 = vmatpush1.msra.mxu0 0.0
    %103 = vmatprep.subr.mxu0 0.0
    %104 = vmatpush1.msra.mxu0 0.0
    %105 = vmatprep.subr.mxu0 0.0
    %106 = vmatpush1.msra.mxu0 0.0
    %107 = vmatprep.subr.mxu0 0.0
    %108 = vmatpush1.msra.mxu0 0.0
    %109 = vmatprep.subr.mxu0 0.0
    %110 = vmatpush1.msra.mxu0 0.0
    %111 = vmatprep.subr.mxu0 0.0
    %112 = vmatpush1.msra.mxu0 0.0
    %113 = vmatprep.subr.mxu0 0.0
    %114 = vmatpush1.msra.mxu0 0.0
    %115 = vmatprep.subr.mxu0 0.0
    %116 = vmatpush1.msra.mxu0 0.0
    %117 = vmatprep.subr.mxu0 0.0
    %118 = vmatpush1.msra.mxu0 0.0
    %119 = vmatprep.subr.mxu0 0.0
    %120 = vmatpush1.msra.mxu0 0.0
    %121 = vmatprep.mubr.f32.mxu0 0.0
    %122 = vmatmul.mubr.f32.gmra.mrb[0].mxu0 %v55
    %v123 = vpop.f32.mrb[0].mxu0
    %v124 = vadd.f32 %v51, %v123
    %v125 = vpop.f32.mrb[0].mxu0
    %126 = vdwg.mxu0
    %127 = vst [vmem:[#allocation7] sm:$0x3] %v124
    // Predicated region
    $region22: #{tpu_custom_call.1} parent=1 // pred_check
      _
    $region23: #{tpu_custom_call.1} parent=1 // pred_check_branch
      %129 = sbr.rel (0) target = $region25
    $region24: #{tpu_custom_call.1} parent=1 // pred_region
      %s131 = ssub.s32 32, 32
      %132 = vsyncadd [#allocation4], %s131
      %s134 = sshll.u32 [#allocation7], 4
      %s135 = int_to_ptr.vmem [resolvable:$true] %s134
      %137 = dma.vmem_to_hbm [thread:$0]  %s135, 32, %s3, [#allocation4]
    $region25: #{tpu_custom_call.1} parent=1 // pred_fallthru
      _
    // Predicated region
    $region26: #{tpu_custom_call.1} parent=1 // pred_check
      _
    $region27: #{tpu_custom_call.1} parent=1 // pred_check_branch
      %139 = sbr.rel (0) target = $region29
    $region28: #{tpu_custom_call.1} parent=1 // pred_region
      %140 = dma.done [#allocation4], 32
    $region29: #{tpu_custom_call.1} parent=1 // pred_fallthru
      _
    %141 = vsyncpa [#allocation3], 1
    %142 = vsyncpa [#allocation6], 1
    %143 = vsyncpa [#allocation4], 1

// kernel: tpu_custom_call.1
$region0: #{tpu_custom_call.1}
  #allocation0 [shape = 'u32[]', space=smem, size = 0x4, offset = 0x4, fixed_abs, tag = 'smem constant byte address 0x4 - core index']
  #allocation1 [shape = 'u32[144,128]{1,0:T(1,128)}', space=vmem, size = 0x12000, scoped, tag = 'internal scratch']
  %s0 = inlined_call_operand.hbm [shape: f32[2,32], index: 0, kind: input, shape index: {}]
  %s1 = inlined_call_operand.hbm [shape: f32[32,128], index: 1, kind: input, shape index: {}]
  %s2 = inlined_call_operand.vmem [shape: f32[1,128], index: 2, kind: input, shape index: {}]
  %s3 = inlined_call_operand.hbm [shape: f32[2,128], index: 3, kind: output, shape index: {}]
  %s4 = sld [smem:[#allocation0]]
  $region30: #{tpu_custom_call.1} parent=0
    _
  %s6 = ssub.s32 1, %s4
  %s7 = scalar_select 0, %s6, %s4
  $region1: #{tpu_custom_call.1} parent=0
    #allocation2 [shape = 'u8[1024]{0}', space=vmem, size = 0x400, scoped, tag = 'input window, operand 0, single buffered']
    #allocation3 [shape = 's32[1]{0}', space=sflag, size = 0x4, scoped, tag = 'scoped memory for tpu_custom_call.1']
    #allocation4 [shape = 's32[1]{0}', space=sflag, size = 0x4, scoped, tag = 'scoped memory for tpu_custom_call.1']
    #allocation5 [shape = 'u8[16384]{0}', space=vmem, size = 0x4000, scoped, tag = 'input window, operand 1, single buffered']
    #allocation6 [shape = 's32[1]{0}', space=sflag, size = 0x4, scoped, tag = 'scoped memory for tpu_custom_call.1']
    #allocation7 [shape = 'u8[1024]{0}', space=vmem, size = 0x400, scoped, tag = 'output window, operand 0, single buffered']
    %8 = vsyncpa [#allocation3], 0
    %9 = vsyncpa [#allocation6], 0
    %10 = vsyncpa [#allocation4], 0
    // Predicated region
    $region2: #{tpu_custom_call.1} parent=1 // pred_check
      _
    $region3: #{tpu_custom_call.1} parent=1 // pred_check_branch
      %12 = sbr.rel (0) target = $region5
    $region4: #{tpu_custom_call.1} parent=1 // pred_region
      %s14 = ssub.s32 32, 32
      %15 = vsyncadd [#allocation3], %s14
      %s17 = sshll.u32 [#allocation2], 4
      %s18 = int_to_ptr.vmem [resolvable:$true] %s17
      %20 = dma.hbm_to_vmem [thread:$0]  %s0, 32, %s18, [#allocation3]
    $region5: #{tpu_custom_call.1} parent=1 // pred_fallthru
      _
    // Predicated region
    $region6: #{tpu_custom_call.1} parent=1 // pred_check
      _
    $region7: #{tpu_custom_call.1} parent=1 // pred_check_branch
      %22 = sbr.rel (0) target = $region9
    $region8: #{tpu_custom_call.1} parent=1 // pred_region
      %s24 = ssub.s32 512, 512
      %25 = vsyncadd [#allocation6], %s24
      %s26 = sshll.u32 [#allocation5], 4
      %s27 = int_to_ptr.vmem [resolvable:$true] %s26
      %32 = dma.hbm_to_vmem [thread:$0]  %s1, 512, %s27, [#allocation6], 128, 128, 8
    $region9: #{tpu_custom_call.1} parent=1 // pred_fallthru
      _
    // Predicated region
    $region10: #{tpu_custom_call.1} parent=1 // pred_check
      _
    $region11: #{tpu_custom_call.1} parent=1 // pred_check_branch
      %34 = sbr.rel (0) target = $region13
    $region12: #{tpu_custom_call.1} parent=1 // pred_region
      _
    $region13: #{tpu_custom_call.1} parent=1 // pred_fallthru
      _
    // Predicated region
    $region14: #{tpu_custom_call.1} parent=1 // pred_check
      _
    $region15: #{tpu_custom_call.1} parent=1 // pred_check_branch
      %36 = sbr.rel (0) target = $region17
    $region16: #{tpu_custom_call.1} parent=1 // pred_region
      %37 = dma.done [#allocation3], 32
    $region17: #{tpu_custom_call.1} parent=1 // pred_fallthru
      _
    // Predicated region
    $region18: #{tpu_custom_call.1} parent=1 // pred_check
      _
    $region19: #{tpu_custom_call.1} parent=1 // pred_check_branch
      %39 = sbr.rel (0) target = $region21
    $region20: #{tpu_custom_call.1} parent=1 // pred_region
      %40 = dma.done [#allocation6], 512
    $region21: #{tpu_custom_call.1} parent=1 // pred_fallthru
      _
    %v41 = vld [vmem:[#allocation2] sm:$0x3]
    %v42 = vld [vmem:[#allocation5] sm:$0xff]
    %v43 = vld [vmem:[#allocation5 + $0x8] sm:$0xff]
    %v44 = vld [vmem:[#allocation5 + $0x10] sm:$0xff]
    %v45 = vld [vmem:[#allocation5 + $0x18] sm:$0xff]
    %v46 = vld [vmem:[%s2] sm:$0x1]
    %v48 = vlaneseq
    %v49 = vshrl.u32 %v48, 7
    %v50 = vsub.s32 0, %v49
    %v51 = vrot.slane %v46, %v50
    %vm53 = vcmask 261120
    %v55 = vsel %vm53, %v41, 0
    %57 = vmatprep.subr.mxu0 0.0
    %58 = vmatpush1.msra.mxu0 %v42
    %59 = vmatprep.subr.mxu0 0.0
    %60 = vmatpush1.msra.mxu0 %v43
    %61 = vmatprep.subr.mxu0 0.0
    %62 = vmatpush1.msra.mxu0 %v44
    %63 = vmatprep.subr.mxu0 0.0
    %64 = vmatpush1.msra.mxu0 %v45
    %65 = vmatprep.subr.mxu0 0.0
    %66 = vmatpush1.msra.mxu0 0.0
    %67 = vmatprep.subr.mxu0 0.0
    %68 = vmatpush1.msra.mxu0 0.0
    %69 = vmatprep.subr.mxu0 0.0
    %70 = vmatpush1.msra.mxu0 0.0
    %71 = vmatprep.subr.mxu0 0.0
    %72 = vmatpush1.msra.mxu0 0.0
    %73 = vmatprep.subr.mxu0 0.0
    %74 = vmatpush1.msra.mxu0 0.0
    %75 = vmatprep.subr.mxu0 0.0
    %76 = vmatpush1.msra.mxu0 0.0
    %77 = vmatprep.subr.mxu0 0.0
    %78 = vmatpush1.msra.mxu0 0.0
    %79 = vmatprep.subr.mxu0 0.0
    %80 = vmatpush1.msra.mxu0 0.0
    %81 = vmatprep.subr.mxu0 0.0
    %82 = vmatpush1.msra.mxu0 0.0
    %83 = vmatprep.subr.mxu0 0.0
    %84 = vmatpush1.msra.mxu0 0.0
    %85 = vmatprep.subr.mxu0 0.0
    %86 = vmatpush1.msra.mxu0 0.0
    %87 = vmatprep.subr.mxu0 0.0
    %88 = vmatpush1.msra.mxu0 0.0
    %89 = vmatprep.subr.mxu0 0.0
    %90 = vmatpush1.msra.mxu0 0.0
    %91 = vmatprep.subr.mxu0 0.0
    %92 = vmatpush1.msra.mxu0 0.0
    %93 = vmatprep.subr.mxu0 0.0
    %94 = vmatpush1.msra.mxu0 0.0
    %95 = vmatprep.subr.mxu0 0.0
    %96 = vmatpush1.msra.mxu0 0.0
    %97 = vmatprep.subr.mxu0 0.0
    %98 = vmatpush1.msra.mxu0 0.0
    %99 = vmatprep.subr.mxu0 0.0
    %100 = vmatpush1.msra.mxu0 0.0
    %101 = vmatprep.subr.mxu0 0.0
    %102 = vmatpush1.msra.mxu0 0.0
    %103 = vmatprep.subr.mxu0 0.0
    %104 = vmatpush1.msra.mxu0 0.0
    %105 = vmatprep.subr.mxu0 0.0
    %106 = vmatpush1.msra.mxu0 0.0
    %107 = vmatprep.subr.mxu0 0.0
    %108 = vmatpush1.msra.mxu0 0.0
    %109 = vmatprep.subr.mxu0 0.0
    %110 = vmatpush1.msra.mxu0 0.0
    %111 = vmatprep.subr.mxu0 0.0
    %112 = vmatpush1.msra.mxu0 0.0
    %113 = vmatprep.subr.mxu0 0.0
    %114 = vmatpush1.msra.mxu0 0.0
    %115 = vmatprep.subr.mxu0 0.0
    %116 = vmatpush1.msra.mxu0 0.0
    %117 = vmatprep.subr.mxu0 0.0
    %118 = vmatpush1.msra.mxu0 0.0
    %119 = vmatprep.subr.mxu0 0.0
    %120 = vmatpush1.msra.mxu0 0.0
    %121 = vmatprep.mubr.f32.mxu0 0.0
    %122 = vmatmul.mubr.f32.gmra.mrb[0].mxu0 %v55
    %v123 = vpop.f32.mrb[0].mxu0
    %v124 = vadd.f32 %v51, %v123
    %v125 = vpop.f32.mrb[0].mxu0
    %126 = vdwg.mxu0
    %127 = vst [vmem:[#allocation7] sm:$0x3] %v124
    // Predicated region
    $region22: #{tpu_custom_call.1} parent=1 // pred_check
      _
    $region23: #{tpu_custom_call.1} parent=1 // pred_check_branch
      %129 = sbr.rel (0) target = $region25
    $region24: #{tpu_custom_call.1} parent=1 // pred_region
      %s131 = ssub.s32 32, 32
      %132 = vsyncadd [#allocation4], %s131
      %s134 = sshll.u32 [#allocation7], 4
      %s135 = int_to_ptr.vmem [resolvable:$true] %s134
      %137 = dma.vmem_to_hbm [thread:$0]  %s135, 32, %s3, [#allocation4]
    $region25: #{tpu_custom_call.1} parent=1 // pred_fallthru
      _
    // Predicated region
    $region26: #{tpu_custom_call.1} parent=1 // pred_check
      _
    $region27: #{tpu_custom_call.1} parent=1 // pred_check_branch
      %139 = sbr.rel (0) target = $region29
    $region28: #{tpu_custom_call.1} parent=1 // pred_region
      %140 = dma.done [#allocation4], 32
    $region29: #{tpu_custom_call.1} parent=1 // pred_fallthru
      _
    %141 = vsyncpa [#allocation3], 1
    %142 = vsyncpa [#allocation6], 1
    %143 = vsyncpa [#allocation4], 1

</llo_original>
